<compile_context>
chip_gen: v6e
topology: v6e:2x2x1
jax: 0.10.0
libtpu: 0.0.40
codegen_flags: <defaults>
</compile_context>

<pallas_src>
import math

import jax
import jax.numpy as jnp
from jax.experimental import pallas as pl
from jax.experimental.pallas import tpu as pltpu


def critic_kernel(x_ref, w1_ref, b1_ref, w2_ref, b2_ref, w3_ref, b3_ref, out_ref):
    # fc1: bf16 MXU matmul, f32 accumulate; bias-add + tanh kept in f32
    # (v5e has no bf16 VPU/EUP).  The bf16 cast of the state tile is a cheap
    # VPU op and halves the MXU passes vs. an f32-emulated matmul.
    x = x_ref[...].astype(jnp.bfloat16)
    h1 = jnp.tanh(
        jnp.dot(x, w1_ref[...], preferred_element_type=jnp.float32) + b1_ref[...]
    )
    # fc2 + tanh (same bf16-in / f32-accumulate scheme).
    h2 = jnp.tanh(
        jnp.dot(h1.astype(jnp.bfloat16), w2_ref[...],
                preferred_element_type=jnp.float32)
        + b2_ref[...]
    )
    # fc3 (value head, output width 1): off the MXU.  VPU multiply with the
    # broadcast (1, hidden) w3 row + XLU lane reduce, all in f32; b3 is a
    # scalar read from SMEM.
    out_ref[...] = (
        jnp.sum(h2 * w3_ref[...], axis=-1, keepdims=True) + b3_ref[0, 0]
    )


def _round8(n):
    return max(8, ((int(n) + 7) // 8) * 8)


def _max_tile_rows():
    # v5e/v6e: 128 MiB physical VMEM + a single TensorCore -> bigger tiles.
    # v7x: 64 MiB VMEM and 2 TCs fed via the grid -> stay at 4096.
    try:
        if pltpu.get_tpu_info().vmem_capacity_bytes >= 100 * 1024 * 1024:
            return 8192
    except Exception:
        pass
    return 4096


def _choose_tile_b(B, requested=None):
    cap = _max_tile_rows()
    t = cap if requested is None else max(8, min(int(requested), cap))
    t = _round8(t)
    if B <= t:
        if B >= 1024:
            # Enough work to split: a 1-step grid would leave one of the two
            # v7x TensorCores idle ("parallel" axis is sharded across TCs).
            t = _round8(math.ceil(B / 2))
        else:
            t = _round8(B)
    else:
        steps = math.ceil(B / t)
        if steps % 2:
            # Prefer an even step count so the megacore split is balanced.
            steps += 1
            t = _round8(math.ceil(B / steps))
    return t


def _vmem_bytes_estimate(tile_b, S, H):
    """Per-step VMEM footprint WITH lane padding (minor dim pads to 128)."""
    lanes = lambda n: ((n + 127) // 128) * 128
    f32, bf16 = 4, 2
    b = 0
    b += 2 * tile_b * lanes(S) * f32          # state block, double-buffered
    b += 2 * tile_b * lanes(1) * f32          # output block, double-buffered
    b += tile_b * lanes(S) * bf16             # state cast to bf16
    b += 2 * tile_b * lanes(H) * f32          # h1, h2 (f32)
    b += tile_b * lanes(H) * bf16             # h1 cast to bf16
    b += 2 * tile_b * lanes(H) * f32          # matmul results pre-bias (headroom)
    b += 4 * (S * H + H * H + 4 * H + 8)      # weights + biases (tiny)
    return b


def _compiler_params(tile_b, S, H):
    kwargs = dict(dimension_semantics=("parallel",))  # shard batch across TCs
    est = _vmem_bytes_estimate(tile_b, S, H)
    if est > 28 * 1024 * 1024:
        # Only needed for the big-tile (>=8192) configs; keep headroom below
        # physical VMEM (64 MiB on v7x, 128 MiB on v5e/v6e).
        cap = 100 * 1024 * 1024
        try:
            cap = int(0.8 * pltpu.get_tpu_info().vmem_capacity_bytes)
        except Exception:
            pass
        kwargs["vmem_limit_bytes"] = min(int(est * 1.4),
                                         max(cap, 32 * 1024 * 1024))
    return pltpu.CompilerParams(**kwargs)


def critic_forward(state, params, *, tile_b=None):
    """state: (B, state_space) float32 -> (B, 1) float32."""
    w1, b1, w2, b2, w3, b3 = params
    B, S = state.shape
    H = w1.shape[1]

    # Matmul weights in bf16 (halves MXU passes / VMEM); biases stay f32.
    w1b = w1.astype(jnp.bfloat16)
    w2b = w2.astype(jnp.bfloat16)
    # fc3 column as a (1, H) f32 row for the VPU dot.
    w3r = jnp.reshape(w3, (1, H)).astype(jnp.float32)

    tile = _choose_tile_b(B, tile_b)

    # Zero-pad the ragged tail (sliced off below).
    Bp = ((B + tile - 1) // tile) * tile
    x = state if Bp == B else jnp.pad(state, ((0, Bp - B), (0, 0)))

    grid = (Bp // tile,)
    # Weights/biases: full block, constant index_map -> fetched once and
    # VMEM-resident across every grid iteration (no per-step re-DMA).
    const2d = lambda a: pl.BlockSpec(a.shape, lambda i: (0, 0))

    out = pl.pallas_call(
        critic_kernel,
        out_shape=jax.ShapeDtypeStruct((Bp, 1), jnp.float32),
        grid=grid,
        in_specs=[
            pl.BlockSpec((tile, S), lambda i: (i, 0)),          # state tile (pipelined)
            const2d(w1b), const2d(b1),
            const2d(w2b), const2d(b2),
            const2d(w3r),
            pl.BlockSpec(memory_space=pltpu.MemorySpace.SMEM),  # b3 scalar in SMEM
        ],
        out_specs=pl.BlockSpec((tile, 1), lambda i: (i, 0)),
        compiler_params=_compiler_params(tile, S, H),
    )(x, w1b, b1, w2b, b2, w3r, b3)
    return out[:B]


def init_critic_params(key, state_space, hidden=64):
    """Deterministic init mirroring the PyTorch module.

    Linear weights use Kaiming-normal (std = sqrt(2 / fan_in)) as in
    `_init_weights`; biases keep the PyTorch-default uniform
    (-1/sqrt(fan_in), 1/sqrt(fan_in)).  Weights are stored (in, out).
    """
    ks = jax.random.split(key, 6)

    def kaiming(k, fan_in, fan_out):
        std = jnp.sqrt(2.0 / fan_in)
        return jax.random.normal(k, (fan_in, fan_out), jnp.float32) * std

    def bias(k, fan_in, fan_out):
        bound = 1.0 / jnp.sqrt(fan_in)
        return jax.random.uniform(
            k, (1, fan_out), jnp.float32, minval=-bound, maxval=bound
        )

    w1 = kaiming(ks[0], state_space, hidden)
    b1 = bias(ks[1], state_space, hidden)
    w2 = kaiming(ks[2], hidden, hidden)
    b2 = bias(ks[3], hidden, hidden)
    w3 = kaiming(ks[4], hidden, 1)
    b3 = bias(ks[5], hidden, 1)
    return (w1, b1, w2, b2, w3, b3)


def _reference_f32(state, params):
    w1, b1, w2, b2, w3, b3 = params
    h = jnp.tanh(state @ w1 + b1)
    h = jnp.tanh(h @ w2 + b2)
    return h @ w3 + b3


def _reference_bf16(state, params):
    """Reference that mirrors the kernel's precision (bf16 dots, f32 accum/EW)."""
    w1, b1, w2, b2, w3, b3 = params
    bf = jnp.bfloat16
    h = jnp.tanh(jnp.dot(state.astype(bf), w1.astype(bf),
                         preferred_element_type=jnp.float32) + b1)
    h = jnp.tanh(jnp.dot(h.astype(bf), w2.astype(bf),
                         preferred_element_type=jnp.float32) + b2)
    return h @ w3 + b3


if __name__ == "__main__":
    key = jax.random.PRNGKey(0)
    k_state, k_state2, k_state3, k_params = jax.random.split(key, 4)

    state_space = 16
    hidden = 64
    params = init_critic_params(k_params, state_space, hidden)

    # 1) Small toy batch (matches the module's intended use).
    batch = 8
    state = jax.random.normal(k_state, (batch, state_space), jnp.float32)
    value = jax.block_until_ready(critic_forward(state, params))
    assert value.shape == (batch, 1)
    assert jnp.allclose(value, _reference_bf16(state, params), atol=2e-3, rtol=2e-3)
    assert jnp.allclose(value, _reference_f32(state, params), atol=5e-2, rtol=5e-2)

    # 2) Ragged batch with an explicit tile to exercise padding + multi-step grid.
    batch2 = 300
    state2 = jax.random.normal(k_state2, (batch2, state_space), jnp.float32)
    value2 = jax.block_until_ready(critic_forward(state2, params, tile_b=256))
    assert value2.shape == (batch2, 1)
    assert jnp.allclose(value2, _reference_bf16(state2, params), atol=2e-3, rtol=2e-3)
    assert jnp.allclose(value2, _reference_f32(state2, params), atol=5e-2, rtol=5e-2)

    # 3) Larger batch under the default tile policy (splits into >=2 grid steps
    #    so both v7x TensorCores are fed; still tiny in absolute size).
    batch3 = 2048
    state3 = jax.random.normal(k_state3, (batch3, state_space), jnp.float32)
    value3 = jax.block_until_ready(critic_forward(state3, params))
    assert value3.shape == (batch3, 1)
    assert jnp.allclose(value3, _reference_bf16(state3, params), atol=2e-3, rtol=2e-3)
    assert jnp.allclose(value3, _reference_f32(state3, params), atol=5e-2, rtol=5e-2)

    print("KERNEL_OK")
</pallas_src>

<mosaic_0001>
module attributes {stable_mosaic.version = 11 : i64} {
  func.func @critic_kernel(%arg0: i32, %arg1: memref<8x16xf32, #tpu.memory_space<vmem>>, %arg2: memref<16x64xbf16, #tpu.memory_space<vmem>>, %arg3: memref<1x64xf32, #tpu.memory_space<vmem>>, %arg4: memref<64x64xbf16, #tpu.memory_space<vmem>>, %arg5: memref<1x64xf32, #tpu.memory_space<vmem>>, %arg6: memref<1x64xf32, #tpu.memory_space<vmem>>, %arg7: memref<1x1xf32, #tpu.memory_space<smem>>, %arg8: memref<8x1xf32, #tpu.memory_space<vmem>>) attributes {dimension_semantics = [#tpu.dimension_semantics<parallel>], iteration_bounds = array<i64: 1>, scalar_prefetch = 0 : i64, scratch_operands = 0 : i64, tpu.core_type = #tpu.core_type<tc>, window_params = [{transform_indices = @transform_0, window_bounds = array<i64: 8, 16>}, {pipeline_mode = #tpu.pipeline_mode<synchronous>, transform_indices = @transform_1, window_bounds = array<i64: 16, 64>}, {pipeline_mode = #tpu.pipeline_mode<synchronous>, transform_indices = @transform_2, window_bounds = array<i64: 1, 64>}, {pipeline_mode = #tpu.pipeline_mode<synchronous>, transform_indices = @transform_3, window_bounds = array<i64: 64, 64>}, {pipeline_mode = #tpu.pipeline_mode<synchronous>, transform_indices = @transform_4, window_bounds = array<i64: 1, 64>}, {pipeline_mode = #tpu.pipeline_mode<synchronous>, transform_indices = @transform_5, window_bounds = array<i64: 1, 64>}, {transform_indices = @transform_6, window_bounds = array<i64: 1, 1>}, {transform_indices = @transform_7, window_bounds = array<i64: 8, 1>}]} {
    %c0 = arith.constant 0 : index
    %c0_0 = arith.constant 0 : index
    %0 = vector.load %arg1[%c0, %c0_0] : memref<8x16xf32, #tpu.memory_space<vmem>>, vector<8x16xf32>
    %1 = arith.truncf %0 : vector<8x16xf32> to vector<8x16xbf16>
    %c0_1 = arith.constant 0 : index
    %c0_2 = arith.constant 0 : index
    %2 = vector.load %arg2[%c0_1, %c0_2] : memref<16x64xbf16, #tpu.memory_space<vmem>>, vector<16x64xbf16>
    %cst = arith.constant dense<0.000000e+00> : vector<8x64xf32>
    %3 = tpu.matmul %1, %2, %cst {dimension_numbers = #tpu.dot_dimension_numbers<[1], [0], [0], [1], [0, 0, 1, 1], [], []>} : vector<8x16xbf16>, vector<16x64xbf16>, vector<8x64xf32> -> vector<8x64xf32>
    %c0_3 = arith.constant 0 : index
    %c0_4 = arith.constant 0 : index
    %4 = vector.load %arg3[%c0_3, %c0_4] : memref<1x64xf32, #tpu.memory_space<vmem>>, vector<1x64xf32>
    %5 = vector.broadcast %4 : vector<1x64xf32> to vector<8x64xf32>
    %6 = arith.addf %3, %5 : vector<8x64xf32>
    %7 = math.tanh %6 : vector<8x64xf32>
    %8 = arith.truncf %7 : vector<8x64xf32> to vector<8x64xbf16>
    %c0_5 = arith.constant 0 : index
    %c0_6 = arith.constant 0 : index
    %9 = vector.load %arg4[%c0_5, %c0_6] : memref<64x64xbf16, #tpu.memory_space<vmem>>, vector<64x64xbf16>
    %cst_7 = arith.constant dense<0.000000e+00> : vector<8x64xf32>
    %10 = tpu.matmul %8, %9, %cst_7 {dimension_numbers = #tpu.dot_dimension_numbers<[1], [0], [0], [1], [0, 0, 1, 1], [], []>} : vector<8x64xbf16>, vector<64x64xbf16>, vector<8x64xf32> -> vector<8x64xf32>
    %c0_8 = arith.constant 0 : index
    %c0_9 = arith.constant 0 : index
    %11 = vector.load %arg5[%c0_8, %c0_9] : memref<1x64xf32, #tpu.memory_space<vmem>>, vector<1x64xf32>
    %12 = vector.broadcast %11 : vector<1x64xf32> to vector<8x64xf32>
    %13 = arith.addf %10, %12 : vector<8x64xf32>
    %14 = math.tanh %13 : vector<8x64xf32>
    %c0_10 = arith.constant 0 : index
    %c0_11 = arith.constant 0 : index
    %15 = vector.load %arg6[%c0_10, %c0_11] : memref<1x64xf32, #tpu.memory_space<vmem>>, vector<1x64xf32>
    %16 = vector.broadcast %15 : vector<1x64xf32> to vector<8x64xf32>
    %17 = arith.mulf %14, %16 : vector<8x64xf32>
    %cst_12 = arith.constant dense<0.000000e+00> : vector<8xf32>
    %18 = vector.multi_reduction <add>, %17, %cst_12 [1] : vector<8x64xf32> to vector<8xf32>
    %19 = vector.shape_cast %18 : vector<8xf32> to vector<8x1xf32>
    %c0_13 = arith.constant 0 : index
    %c0_14 = arith.constant 0 : index
    %20 = memref.load %arg7[%c0_13, %c0_14] : memref<1x1xf32, #tpu.memory_space<smem>>
    %21 = vector.broadcast %20 : f32 to vector<8x1xf32>
    %22 = arith.addf %19, %21 : vector<8x1xf32>
    %c0_15 = arith.constant 0 : index
    %c0_16 = arith.constant 0 : index
    %23 = vector.load %arg8[%c0_15, %c0_16] : memref<8x1xf32, #tpu.memory_space<vmem>>, vector<8x1xf32>
    tpu.vector_store %arg8[%c0_15, %c0_16], %22 {strides = array<i32>} : memref<8x1xf32, #tpu.memory_space<vmem>>, vector<8x1xf32>,
    return
  }
  func.func @transform_0(%arg0: i32) -> (i32, i32) {
    %c0_i32 = arith.constant 0 : i32
    %c0_i32_0 = arith.constant 0 : i32
    return %arg0, %c0_i32 : i32, i32
  }
  func.func @transform_1(%arg0: i32) -> (i32, i32) {
    %c0_i32 = arith.constant 0 : i32
    %c0_i32_0 = arith.constant 0 : i32
    %c0_i32_1 = arith.constant 0 : i32
    return %c0_i32, %c0_i32_0 : i32, i32
  }
  func.func @transform_2(%arg0: i32) -> (i32, i32) {
    %c0_i32 = arith.constant 0 : i32
    %c0_i32_0 = arith.constant 0 : i32
    %c0_i32_1 = arith.constant 0 : i32
    return %c0_i32, %c0_i32_0 : i32, i32
  }
  func.func @transform_3(%arg0: i32) -> (i32, i32) {
    %c0_i32 = arith.constant 0 : i32
    %c0_i32_0 = arith.constant 0 : i32
    %c0_i32_1 = arith.constant 0 : i32
    return %c0_i32, %c0_i32_0 : i32, i32
  }
  func.func @transform_4(%arg0: i32) -> (i32, i32) {
    %c0_i32 = arith.constant 0 : i32
    %c0_i32_0 = arith.constant 0 : i32
    %c0_i32_1 = arith.constant 0 : i32
    return %c0_i32, %c0_i32_0 : i32, i32
  }
  func.func @transform_5(%arg0: i32) -> (i32, i32) {
    %c0_i32 = arith.constant 0 : i32
    %c0_i32_0 = arith.constant 0 : i32
    %c0_i32_1 = arith.constant 0 : i32
    return %c0_i32, %c0_i32_0 : i32, i32
  }
  func.func @transform_6(%arg0: i32) -> (i32, i32) {
    %c0_i32 = arith.constant 0 : i32
    %c0_i32_0 = arith.constant 0 : i32
    %c0_i32_1 = arith.constant 0 : i32
    return %c0_i32, %c0_i32_0 : i32, i32
  }
  func.func @transform_7(%arg0: i32) -> (i32, i32) {
    %c0_i32 = arith.constant 0 : i32
    %c0_i32_0 = arith.constant 0 : i32
    return %arg0, %c0_i32 : i32, i32
  }
}

</mosaic_0001>

<llo_original>
// kernel: tpu_custom_call.1
$region0: #{tpu_custom_call.1}
  #allocation0 [shape = 'u32[]', space=smem, size = 0x4, offset = 0x4, fixed_abs, tag = 'smem constant byte address 0x4 - core index']
  #allocation1 [shape = 'u32[144,128]{1,0:T(1,128)}', space=vmem, size = 0x12000, scoped, tag = 'internal scratch']
  #allocation2 [shape = 'f32[1,1]{1,0:T(1,128)S(6)}', space=smem, size = 0x200, scoped, tag = 'scoped memory for tpu_custom_call.1']
  %s0 = inlined_call_operand.hbm [shape: f32[8,16], index: 0, kind: input, shape index: {}]
  %s1 = inlined_call_operand.hbm [shape: bf16[16,64], index: 1, kind: input, shape index: {}]
  %s2 = inlined_call_operand.vmem [shape: f32[1,64], index: 2, kind: input, shape index: {}]
  %s3 = inlined_call_operand.hbm [shape: bf16[64,64], index: 3, kind: input, shape index: {}]
  %s4 = inlined_call_operand.vmem [shape: f32[1,64], index: 4, kind: input, shape index: {}]
  %s5 = inlined_call_operand.vmem [shape: f32[1,64], index: 5, kind: input, shape index: {}]
  %s6 = inlined_call_operand.<no memory space> [shape: f32[1,1], index: 6, kind: input, shape index: {}]
  %s7 = inlined_call_operand.vmem [shape: f32[8,1], index: 7, kind: output, shape index: {}]
  %s8 = sld [smem:[#allocation0]]
  $region50: #{tpu_custom_call.1} parent=0
    _
  %s10 = ssub.s32 1, %s8
  %s11 = scalar_select 0, %s10, %s8
  %12 = sst [smem:[#allocation2]] %s6
  $region1: #{tpu_custom_call.1} parent=0
    #allocation3 [shape = 'u8[4096]{0}', space=vmem, size = 0x1000, scoped, tag = 'input window, operand 0, single buffered']
    #allocation4 [shape = 's32[1]{0}', space=sflag, size = 0x4, scoped, tag = 'scoped memory for tpu_custom_call.1']
    #allocation5 [shape = 'u8[4096]{0}', space=vmem, size = 0x1000, scoped, tag = 'input window, operand 1, single buffered']
    #allocation6 [shape = 's32[1]{0}', space=sflag, size = 0x4, scoped, tag = 'scoped memory for tpu_custom_call.1']
    #allocation7 [shape = 'u8[16384]{0}', space=vmem, size = 0x4000, scoped, tag = 'input window, operand 3, single buffered']
    %13 = vsyncpa [#allocation4], 0
    %14 = vsyncpa [#allocation6], 0
    // Predicated region
    $region2: #{tpu_custom_call.1} parent=1 // pred_check
      _
    $region3: #{tpu_custom_call.1} parent=1 // pred_check_branch
      %16 = sbr.rel (0) target = $region5
    $region4: #{tpu_custom_call.1} parent=1 // pred_region
      %s18 = ssub.s32 128, 128
      %19 = vsyncadd [#allocation4], %s18
      %s21 = sshll.u32 [#allocation3], 4
      %s22 = int_to_ptr.vmem [resolvable:$true] %s21
      %24 = dma.hbm_to_vmem [thread:$0]  %s0, 128, %s22, [#allocation4]
    $region5: #{tpu_custom_call.1} parent=1 // pred_fallthru
      _
    // Predicated region
    $region6: #{tpu_custom_call.1} parent=1 // pred_check
      _
    $region7: #{tpu_custom_call.1} parent=1 // pred_check_branch
      %26 = sbr.rel (0) target = $region9
    $region8: #{tpu_custom_call.1} parent=1 // pred_region
      %s28 = ssub.s32 128, 128
      %29 = vsyncadd [#allocation6], %s28
      %s30 = sshll.u32 [#allocation5], 4
      %s31 = int_to_ptr.vmem [resolvable:$true] %s30
      %36 = dma.hbm_to_vmem [thread:$0]  %s1, 128, %s31, [#allocation6], 64, 64, 4
    $region9: #{tpu_custom_call.1} parent=1 // pred_fallthru
      _
    // Predicated region
    $region10: #{tpu_custom_call.1} parent=1 // pred_check
      _
    $region11: #{tpu_custom_call.1} parent=1 // pred_check_branch
      %38 = sbr.rel (0) target = $region13
    $region12: #{tpu_custom_call.1} parent=1 // pred_region
      _
    $region13: #{tpu_custom_call.1} parent=1 // pred_fallthru
      _
    // Predicated region
    $region14: #{tpu_custom_call.1} parent=1 // pred_check
      _
    $region15: #{tpu_custom_call.1} parent=1 // pred_check_branch
      %40 = sbr.rel (0) target = $region17
    $region16: #{tpu_custom_call.1} parent=1 // pred_region
      %s42 = ssub.s32 512, 512
      %43 = vsyncadd [#allocation6], %s42
      %s44 = sshll.u32 [#allocation7], 4
      %s45 = int_to_ptr.vmem [resolvable:$true] %s44
      %50 = dma.hbm_to_vmem [thread:$0]  %s3, 512, %s45, [#allocation6], 64, 64, 4
    $region17: #{tpu_custom_call.1} parent=1 // pred_fallthru
      _
    // Predicated region
    $region18: #{tpu_custom_call.1} parent=1 // pred_check
      _
    $region19: #{tpu_custom_call.1} parent=1 // pred_check_branch
      %52 = sbr.rel (0) target = $region21
    $region20: #{tpu_custom_call.1} parent=1 // pred_region
      _
    $region21: #{tpu_custom_call.1} parent=1 // pred_fallthru
      _
    // Predicated region
    $region22: #{tpu_custom_call.1} parent=1 // pred_check
      _
    $region23: #{tpu_custom_call.1} parent=1 // pred_check_branch
      %54 = sbr.rel (0) target = $region25
    $region24: #{tpu_custom_call.1} parent=1 // pred_region
      _
    $region25: #{tpu_custom_call.1} parent=1 // pred_fallthru
      _
    // Predicated region
    $region26: #{tpu_custom_call.1} parent=1 // pred_check
      _
    $region27: #{tpu_custom_call.1} parent=1 // pred_check_branch
      %56 = sbr.rel (0) target = $region29
    $region28: #{tpu_custom_call.1} parent=1 // pred_region
      _
    $region29: #{tpu_custom_call.1} parent=1 // pred_fallthru
      _
    // Predicated region
    $region30: #{tpu_custom_call.1} parent=1 // pred_check
      _
    $region31: #{tpu_custom_call.1} parent=1 // pred_check_branch
      %58 = sbr.rel (0) target = $region33
    $region32: #{tpu_custom_call.1} parent=1 // pred_region
      %59 = dma.done [#allocation4], 128
    $region33: #{tpu_custom_call.1} parent=1 // pred_fallthru
      _
    // Predicated region
    $region34: #{tpu_custom_call.1} parent=1 // pred_check
      _
    $region35: #{tpu_custom_call.1} parent=1 // pred_check_branch
      %61 = sbr.rel (0) target = $region37
    $region36: #{tpu_custom_call.1} parent=1 // pred_region
      %62 = dma.done [#allocation6], 128
    $region37: #{tpu_custom_call.1} parent=1 // pred_fallthru
      _
    // Predicated region
    $region38: #{tpu_custom_call.1} parent=1 // pred_check
      _
    $region39: #{tpu_custom_call.1} parent=1 // pred_check_branch
      %64 = sbr.rel (0) target = $region41
    $region40: #{tpu_custom_call.1} parent=1 // pred_region
      %65 = dma.done [#allocation6], 512
    $region41: #{tpu_custom_call.1} parent=1 // pred_fallthru
      _
    %v67 = vld [vmem:[#allocation3] sm:$0xff]
    %v68 = vpack.c.bf16 %v67, %v67
    %v69 = vld [vmem:[#allocation5] sm:$0xf]
    %v70 = vld [vmem:[#allocation5 + $0x4] sm:$0xf]
    %v71 = vld [vmem:[%s2] sm:$0x1]
    %v73 = vlaneseq
    %v74 = vshrl.u32 %v73, 7
    %v75 = vsub.s32 0, %v74
    %v76 = vrot.slane %v71, %v75
    %v80 = vunpack.c.l.b16 %v69
    %v81 = vunpack.c.l.b16 %v70
    %v82 = vpack.c.b16 %v81, %v80
    %vm84 = vcmask 130048
    %v86 = vsel %vm84, %v68, 0
    %88 = vmatprep.subr.bf16.mxu0 0
    %89 = vmatpush1.bf16.msra.mxu0 0
    %90 = vmatprep.subr.bf16.mxu0 0
    %91 = vmatpush1.bf16.msra.mxu0 0
    %92 = vmatprep.subr.bf16.mxu0 0
    %93 = vmatpush1.bf16.msra.mxu0 0
    %94 = vmatprep.subr.bf16.mxu0 0
    %95 = vmatpush1.bf16.msra.mxu0 0
    %96 = vmatprep.subr.bf16.mxu0 0
    %97 = vmatpush1.bf16.msra.mxu0 0
    %98 = vmatprep.subr.bf16.mxu0 0
    %99 = vmatpush1.bf16.msra.mxu0 0
    %100 = vmatprep.subr.bf16.mxu0 0
    %101 = vmatpush1.bf16.msra.mxu0 0
    %102 = vmatprep.subr.bf16.mxu0 0
    %103 = vmatpush1.bf16.msra.mxu0 %v82
    %104 = vmatprep.subr.bf16.mxu0 0
    %105 = vmatpush2.bf16.msra.mxu0 0
    %106 = vmatprep.subr.bf16.mxu0 0
    %107 = vmatpush2.bf16.msra.mxu0 0
    %108 = vmatprep.subr.bf16.mxu0 0
    %109 = vmatpush2.bf16.msra.mxu0 0
    %110 = vmatprep.subr.bf16.mxu0 0
    %111 = vmatpush2.bf16.msra.mxu0 0
    %112 = vmatprep.subr.bf16.mxu0 0
    %113 = vmatpush2.bf16.msra.mxu0 0
    %114 = vmatprep.subr.bf16.mxu0 0
    %115 = vmatpush2.bf16.msra.mxu0 0
    %116 = vmatprep.subr.bf16.mxu0 0
    %117 = vmatpush2.bf16.msra.mxu0 0
    %118 = vmatprep.subr.bf16.mxu0 0
    %119 = vmatpush2.bf16.msra.mxu0 0
    %120 = vmatprep.mubr.bf16.mxu0 0
    %121 = vmatmul.mubr.bf16.gmra.mxu0 %v86
    %v122 = vpop.f32.mrf.mxu0
    %v123 = vadd.f32 %v76, %v122
    %v124 = vpop.f32.mrf.mxu0
    %v125 = vpop.f32.mrf.mxu0
    %v126 = vpop.f32.mrf.mxu0
    %127 = vdwg.mxu0
    %v128 = vtanh.pop %v123
    %v129 = vpack.c.bf16 %v128, %v128
    %v130 = vld [vmem:[#allocation7] sm:$0xf]
    %v131 = vld [vmem:[#allocation7 + $0x4] sm:$0xf]
    %v132 = vld [vmem:[#allocation7 + $0x8] sm:$0xf]
    %v133 = vld [vmem:[#allocation7 + $0xc] sm:$0xf]
    %v134 = vld [vmem:[#allocation7 + $0x10] sm:$0xf]
    %v135 = vld [vmem:[#allocation7 + $0x14] sm:$0xf]
    %v136 = vld [vmem:[#allocation7 + $0x18] sm:$0xf]
    %v137 = vld [vmem:[#allocation7 + $0x1c] sm:$0xf]
    %v138 = vld [vmem:[%s4] sm:$0x1]
    %v140 = vlaneseq
    %v141 = vshrl.u32 %v140, 7
    %v142 = vsub.s32 0, %v141
    %v143 = vrot.slane %v138, %v142
    %v153 = vunpack.c.l.b16 %v130
    %v154 = vunpack.c.l.b16 %v131
    %v155 = vunpack.c.l.b16 %v132
    %v156 = vunpack.c.l.b16 %v133
    %v157 = vunpack.c.l.b16 %v134
    %v158 = vunpack.c.l.b16 %v135
    %v159 = vunpack.c.l.b16 %v136
    %v160 = vunpack.c.l.b16 %v137
    %v161 = vpack.c.b16 %v154, %v153
    %v162 = vpack.c.b16 %v156, %v155
    %v163 = vpack.c.b16 %v158, %v157
    %v164 = vpack.c.b16 %v160, %v159
    %vm169 = vcmask 523264
    %v171 = vsel %vm169, %v129, 0
    %173 = vmatprep.subr.bf16.mxu0 0
    %174 = vmatpush1.bf16.msra.mxu0 0
    %175 = vmatprep.subr.bf16.mxu0 0
    %176 = vmatpush1.bf16.msra.mxu0 0
    %177 = vmatprep.subr.bf16.mxu0 0
    %178 = vmatpush1.bf16.msra.mxu0 0
    %179 = vmatprep.subr.bf16.mxu0 0
    %180 = vmatpush1.bf16.msra.mxu0 0
    %181 = vmatprep.subr.bf16.mxu0 0
    %182 = vmatpush1.bf16.msra.mxu0 %v164
    %183 = vmatprep.subr.bf16.mxu0 0
    %184 = vmatpush1.bf16.msra.mxu0 %v163
    %185 = vmatprep.subr.bf16.mxu0 0
    %186 = vmatpush1.bf16.msra.mxu0 %v162
    %187 = vmatprep.subr.bf16.mxu0 0
    %188 = vmatpush1.bf16.msra.mxu0 %v161
    %189 = vmatprep.subr.bf16.mxu0 0
    %190 = vmatpush2.bf16.msra.mxu0 0
    %191 = vmatprep.subr.bf16.mxu0 0
    %192 = vmatpush2.bf16.msra.mxu0 0
    %193 = vmatprep.subr.bf16.mxu0 0
    %194 = vmatpush2.bf16.msra.mxu0 0
    %195 = vmatprep.subr.bf16.mxu0 0
    %196 = vmatpush2.bf16.msra.mxu0 0
    %197 = vmatprep.subr.bf16.mxu0 0
    %198 = vmatpush2.bf16.msra.mxu0 0
    %199 = vmatprep.subr.bf16.mxu0 0
    %200 = vmatpush2.bf16.msra.mxu0 0
    %201 = vmatprep.subr.bf16.mxu0 0
    %202 = vmatpush2.bf16.msra.mxu0 0
    %203 = vmatprep.subr.bf16.mxu0 0
    %204 = vmatpush2.bf16.msra.mxu0 0
    %205 = vmatprep.mubr.bf16.mxu0 0
    %206 = vmatmul.mubr.bf16.gmra.mxu0 %v171
    %v207 = vpop.f32.mrf.mxu0
    %v208 = vadd.f32 %v143, %v207
    %v209 = vpop.f32.mrf.mxu0
    %v210 = vpop.f32.mrf.mxu0
    %v211 = vpop.f32.mrf.mxu0
    %212 = vdwg.mxu0
    %v213 = vtanh.pop %v208
    %v214 = vld [vmem:[%s5] sm:$0x1]
    %v216 = vlaneseq
    %v217 = vshrl.u32 %v216, 7
    %v218 = vsub.s32 0, %v217
    %v219 = vrot.slane %v214, %v218
    %v221 = vmul.f32 %v213, %v219
    %v222 = vsel %vm169, %v221, 0.0
    %223 = vadd.xlane.f32.xlu0 %v222
    %v224 = vpop.xlane.xlu0 %223
    %s225 = sld [smem:[#allocation2]]
    %v226 = vstv %s225
    %v227 = vadd.f32 %v224, %v226
    %vm228 = vcmask 7168
    %229 = vst.msk [vmem:[%s7] sm:$0xff] %vm228, %v227
    // Predicated region
    $region42: #{tpu_custom_call.1} parent=1 // pred_check
      _
    $region43: #{tpu_custom_call.1} parent=1 // pred_check_branch
      %231 = sbr.rel (0) target = $region45
    $region44: #{tpu_custom_call.1} parent=1 // pred_region
      _
    $region45: #{tpu_custom_call.1} parent=1 // pred_fallthru
      _
    // Predicated region
    $region46: #{tpu_custom_call.1} parent=1 // pred_check
      _
    $region47: #{tpu_custom_call.1} parent=1 // pred_check_branch
      %233 = sbr.rel (0) target = $region49
    $region48: #{tpu_custom_call.1} parent=1 // pred_region
      _
    $region49: #{tpu_custom_call.1} parent=1 // pred_fallthru
      _
    %234 = vsyncpa [#allocation4], 1
    %235 = vsyncpa [#allocation6], 1

</llo_original>
